<compile_context>
chip_gen: v7x
topology: tpu7x:2x2x1
jax: 0.10.0
libtpu: 0.0.40
codegen_flags: <defaults>
</compile_context>

<pallas_src>
import jax
import jax.numpy as jnp
from jax.experimental import pallas as pl
from jax.experimental.pallas import tpu as pltpu

IN_DIM = 20
HIDDEN = 256
OUT_DIM = 10


def _round_up(n: int, m: int) -> int:
    return ((n + m - 1) // m) * m


def mlp_kernel(x_ref, w1_ref, b1_ref, w2_ref, b2_ref, o_ref):
    # Biases read once per grid step (no inner loop -> no re-broadcast).
    b1 = b1_ref[...]                      # (1, 256) f32
    b2 = b2_ref[...]                      # (1, 10)  f32
    # Hidden layer: (TB, 20) @ (20, 256) + b1 -> ReLU   (f32 MXU accumulate)
    h = jnp.dot(x_ref[...], w1_ref[...], preferred_element_type=jnp.float32)
    h = jnp.maximum(h + b1, 0.0)
    # Output layer: (TB, 256) @ (256, 10) + b2.  h is cast to the weight
    # dtype so the optional bf16 path keeps the MXU in bf16; no-op for f32.
    out = jnp.dot(h.astype(w2_ref.dtype), w2_ref[...],
                  preferred_element_type=jnp.float32) + b2
    o_ref[...] = out.astype(o_ref.dtype)


def prepare_params(w1_pt, b1, w2_pt, b2):
    """PyTorch nn.Linear layout (out, in) -> kernel layout (in, out)."""
    w1 = w1_pt.T                     # (20, 256)
    b1 = b1.reshape(1, HIDDEN)       # (1, 256)
    w2 = w2_pt.T                     # (256, 10)
    b2 = b2.reshape(1, OUT_DIM)      # (1, 10)
    return w1, b1, w2, b2


def mlp_forward(x, w1, b1, w2, b2, *, tb_max=4096, min_grid_steps=4,
                use_bf16_inputs=False):
    """x: (B, 20); w1: (20, 256); b1: (1, 256); w2: (256, 10); b2: (1, 10).
    Returns (B, 10) float32."""
    B, K = x.shape
    H = w1.shape[1]
    N = w2.shape[1]

    # Batch tile: multiple of 8 sublanes, capped at tb_max, and sized so the
    # grid keeps >= min_grid_steps steps at large B (v7x dual-TC sharding and
    # DMA/compute overlap).  Ragged last block is masked by Pallas (no pad).
    TB = min(tb_max, _round_up(pl.cdiv(B, min_grid_steps), 8))
    grid = (pl.cdiv(B, TB),)

    if use_bf16_inputs:
        # Halves input DMA bytes; accumulation stays f32 (looser ~1e-2 match).
        x = x.astype(jnp.bfloat16)
        w1 = w1.astype(jnp.bfloat16)
        w2 = w2.astype(jnp.bfloat16)

    out = pl.pallas_call(
        mlp_kernel,
        out_shape=jax.ShapeDtypeStruct((B, N), jnp.float32),
        grid_spec=pl.GridSpec(
            grid=grid,
            in_specs=[
                # x tiles stream over the batch grid axis.
                pl.BlockSpec((TB, K), lambda i: (i, 0)),
                # Weights / biases: same block every step -> VMEM-resident.
                pl.BlockSpec((K, H), lambda i: (0, 0)),
                pl.BlockSpec((1, H), lambda i: (0, 0)),
                pl.BlockSpec((H, N), lambda i: (0, 0)),
                pl.BlockSpec((1, N), lambda i: (0, 0)),
            ],
            # Block spans the full 10-wide last dim -> HBM writeback per step
            # is one contiguous region of TB*40 bytes (no padded columns).
            out_specs=pl.BlockSpec((TB, N), lambda i: (i, 0)),
        ),
        compiler_params=pltpu.CompilerParams(
            # Batch tiles are independent -> shard across v7x's 2 TensorCores.
            dimension_semantics=("parallel",),
            # Explicit limit so TB=4096 tiles also fit under v5e's 16 MiB
            # scoped default; well below physical VMEM on every generation.
            vmem_limit_bytes=32 << 20,
        ),
    )(x, w1, b1, w2, b2)

    return out


def init_params(key):
    """Deterministic init matching nn.Linear shapes (Kaiming-uniform-ish),
    in PyTorch layout (out, in)."""
    k1, k2, k3, k4 = jax.random.split(key, 4)
    lim1 = 1.0 / jnp.sqrt(IN_DIM)
    w1_pt = jax.random.uniform(k1, (HIDDEN, IN_DIM), jnp.float32, -lim1, lim1)
    b1 = jax.random.uniform(k2, (HIDDEN,), jnp.float32, -lim1, lim1)
    lim2 = 1.0 / jnp.sqrt(HIDDEN)
    w2_pt = jax.random.uniform(k3, (OUT_DIM, HIDDEN), jnp.float32, -lim2, lim2)
    b2 = jax.random.uniform(k4, (OUT_DIM,), jnp.float32, -lim2, lim2)
    return w1_pt, b1, w2_pt, b2


if __name__ == "__main__":
    key = jax.random.PRNGKey(0)
    kx, kp = jax.random.split(key)

    # X = torch.rand(2, 20) -> uniform [0, 1)
    x = jax.random.uniform(kx, (2, IN_DIM), jnp.float32)
    w1_pt, b1_v, w2_pt, b2_v = init_params(kp)
    w1, b1, w2, b2 = prepare_params(w1_pt, b1_v, w2_pt, b2_v)

    out = mlp_forward(x, w1, b1, w2, b2)
    jax.block_until_ready(out)

    # Cross-check against plain-JAX reference with the original PyTorch-layout
    # parameters and identical forward semantics.
    ref = jnp.maximum(x @ w1_pt.T + b1_v, 0.0) @ w2_pt.T + b2_v
    assert out.shape == (2, OUT_DIM)
    assert jnp.allclose(out, ref, atol=1e-5, rtol=1e-5)
    print("KERNEL_OK")
</pallas_src>

<mosaic_0001>
module attributes {stable_mosaic.version = 11 : i64} {
  func.func @mlp_kernel(%arg0: i32, %arg1: memref<8x20xf32, #tpu.memory_space<vmem>>, %arg2: memref<20x256xf32, #tpu.memory_space<vmem>>, %arg3: memref<1x256xf32, #tpu.memory_space<vmem>>, %arg4: memref<256x10xf32, #tpu.memory_space<vmem>>, %arg5: memref<1x10xf32, #tpu.memory_space<vmem>>, %arg6: memref<8x10xf32, #tpu.memory_space<vmem>>) attributes {dimension_semantics = [#tpu.dimension_semantics<parallel>], iteration_bounds = array<i64: 1>, scalar_prefetch = 0 : i64, scratch_operands = 0 : i64, tpu.core_type = #tpu.core_type<tc>, window_params = [{transform_indices = @transform_0, window_bounds = array<i64: 8, 20>}, {pipeline_mode = #tpu.pipeline_mode<synchronous>, transform_indices = @transform_1, window_bounds = array<i64: 20, 256>}, {pipeline_mode = #tpu.pipeline_mode<synchronous>, transform_indices = @transform_2, window_bounds = array<i64: 1, 256>}, {pipeline_mode = #tpu.pipeline_mode<synchronous>, transform_indices = @transform_3, window_bounds = array<i64: 256, 10>}, {pipeline_mode = #tpu.pipeline_mode<synchronous>, transform_indices = @transform_4, window_bounds = array<i64: 1, 10>}, {transform_indices = @transform_5, window_bounds = array<i64: 8, 10>}]} {
    %c0 = arith.constant 0 : index
    %c0_0 = arith.constant 0 : index
    %0 = vector.load %arg3[%c0, %c0_0] : memref<1x256xf32, #tpu.memory_space<vmem>>, vector<1x256xf32>
    %c0_1 = arith.constant 0 : index
    %c0_2 = arith.constant 0 : index
    %1 = vector.load %arg5[%c0_1, %c0_2] : memref<1x10xf32, #tpu.memory_space<vmem>>, vector<1x10xf32>
    %c0_3 = arith.constant 0 : index
    %c0_4 = arith.constant 0 : index
    %2 = vector.load %arg1[%c0_3, %c0_4] : memref<8x20xf32, #tpu.memory_space<vmem>>, vector<8x20xf32>
    %c0_5 = arith.constant 0 : index
    %c0_6 = arith.constant 0 : index
    %3 = vector.load %arg2[%c0_5, %c0_6] : memref<20x256xf32, #tpu.memory_space<vmem>>, vector<20x256xf32>
    %cst = arith.constant dense<0.000000e+00> : vector<8x256xf32>
    %4 = tpu.matmul %2, %3, %cst {dimension_numbers = #tpu.dot_dimension_numbers<[1], [0], [0], [1], [0, 0, 1, 1], [], []>} : vector<8x20xf32>, vector<20x256xf32>, vector<8x256xf32> -> vector<8x256xf32>
    %5 = vector.broadcast %0 : vector<1x256xf32> to vector<8x256xf32>
    %6 = arith.addf %4, %5 : vector<8x256xf32>
    %cst_7 = arith.constant 0.000000e+00 : f32
    %7 = vector.broadcast %cst_7 : f32 to vector<8x256xf32>
    %8 = arith.maximumf %6, %7 : vector<8x256xf32>
    %c0_8 = arith.constant 0 : index
    %c0_9 = arith.constant 0 : index
    %9 = vector.load %arg4[%c0_8, %c0_9] : memref<256x10xf32, #tpu.memory_space<vmem>>, vector<256x10xf32>
    %cst_10 = arith.constant dense<0.000000e+00> : vector<8x10xf32>
    %10 = tpu.matmul %8, %9, %cst_10 {dimension_numbers = #tpu.dot_dimension_numbers<[1], [0], [0], [1], [0, 0, 1, 1], [], []>} : vector<8x256xf32>, vector<256x10xf32>, vector<8x10xf32> -> vector<8x10xf32>
    %11 = vector.broadcast %1 : vector<1x10xf32> to vector<8x10xf32>
    %12 = arith.addf %10, %11 : vector<8x10xf32>
    %c0_11 = arith.constant 0 : index
    %c0_12 = arith.constant 0 : index
    %13 = vector.load %arg6[%c0_11, %c0_12] : memref<8x10xf32, #tpu.memory_space<vmem>>, vector<8x10xf32>
    tpu.vector_store %arg6[%c0_11, %c0_12], %12 {strides = array<i32>} : memref<8x10xf32, #tpu.memory_space<vmem>>, vector<8x10xf32>,
    return
  }
  func.func @transform_0(%arg0: i32) -> (i32, i32) {
    %c0_i32 = arith.constant 0 : i32
    %c0_i32_0 = arith.constant 0 : i32
    return %arg0, %c0_i32 : i32, i32
  }
  func.func @transform_1(%arg0: i32) -> (i32, i32) {
    %c0_i32 = arith.constant 0 : i32
    %c0_i32_0 = arith.constant 0 : i32
    %c0_i32_1 = arith.constant 0 : i32
    return %c0_i32, %c0_i32_0 : i32, i32
  }
  func.func @transform_2(%arg0: i32) -> (i32, i32) {
    %c0_i32 = arith.constant 0 : i32
    %c0_i32_0 = arith.constant 0 : i32
    %c0_i32_1 = arith.constant 0 : i32
    return %c0_i32, %c0_i32_0 : i32, i32
  }
  func.func @transform_3(%arg0: i32) -> (i32, i32) {
    %c0_i32 = arith.constant 0 : i32
    %c0_i32_0 = arith.constant 0 : i32
    %c0_i32_1 = arith.constant 0 : i32
    return %c0_i32, %c0_i32_0 : i32, i32
  }
  func.func @transform_4(%arg0: i32) -> (i32, i32) {
    %c0_i32 = arith.constant 0 : i32
    %c0_i32_0 = arith.constant 0 : i32
    %c0_i32_1 = arith.constant 0 : i32
    return %c0_i32, %c0_i32_0 : i32, i32
  }
  func.func @transform_5(%arg0: i32) -> (i32, i32) {
    %c0_i32 = arith.constant 0 : i32
    %c0_i32_0 = arith.constant 0 : i32
    return %arg0, %c0_i32 : i32, i32
  }
}

</mosaic_0001>

<llo_original>
// kernel: tpu_custom_call.1
$region0: #{tpu_custom_call.1}
  #allocation0 [shape = 'u32[]', space=smem, size = 0x4, offset = 0x4, fixed_abs, tag = 'smem constant byte address 0x4 - core index']
  #allocation1 [shape = 'u32[144,128]{1,0:T(1,128)}', space=vmem, size = 0x12000, scoped, tag = 'internal scratch']
  %s0 = inlined_call_operand.vmem [shape: f32[2,20], index: 0, kind: input, shape index: {}]
  %s1 = inlined_call_operand.vmem [shape: f32[20,256], index: 1, kind: input, shape index: {}]
  %s2 = inlined_call_operand.vmem [shape: f32[1,256], index: 2, kind: input, shape index: {}]
  %s3 = inlined_call_operand.vmem [shape: f32[256,10], index: 3, kind: input, shape index: {}]
  %s4 = inlined_call_operand.vmem [shape: f32[1,10], index: 4, kind: input, shape index: {}]
  %s5 = inlined_call_operand.hbm [shape: f32[2,10], index: 5, kind: output, shape index: {}]
  %s6 = sld [smem:[#allocation0]]
  $region30: #{tpu_custom_call.1} parent=0
    _
  %s8 = ssub.s32 1, %s6
  %s9 = scalar_select 0, %s8, %s6
  $region1: #{tpu_custom_call.1} parent=0
    #allocation2 [shape = 'u8[4096]{0}', space=vmem, size = 0x1000, scoped, tag = 'output window, operand 0, single buffered']
    #allocation3 [shape = 's32[1]{0}', space=sflag, size = 0x4, scoped, tag = 'scoped memory for tpu_custom_call.1']
    %10 = vsyncpa [#allocation3], 0
    // Predicated region
    $region2: #{tpu_custom_call.1} parent=1 // pred_check
      _
    $region3: #{tpu_custom_call.1} parent=1 // pred_check_branch
      %12 = sbr.rel (0) target = $region5
    $region4: #{tpu_custom_call.1} parent=1 // pred_region
      _
    $region5: #{tpu_custom_call.1} parent=1 // pred_fallthru
      _
    // Predicated region
    $region6: #{tpu_custom_call.1} parent=1 // pred_check
      _
    $region7: #{tpu_custom_call.1} parent=1 // pred_check_branch
      %14 = sbr.rel (0) target = $region9
    $region8: #{tpu_custom_call.1} parent=1 // pred_region
      _
    $region9: #{tpu_custom_call.1} parent=1 // pred_fallthru
      _
    // Predicated region
    $region10: #{tpu_custom_call.1} parent=1 // pred_check
      _
    $region11: #{tpu_custom_call.1} parent=1 // pred_check_branch
      %16 = sbr.rel (0) target = $region13
    $region12: #{tpu_custom_call.1} parent=1 // pred_region
      _
    $region13: #{tpu_custom_call.1} parent=1 // pred_fallthru
      _
    // Predicated region
    $region14: #{tpu_custom_call.1} parent=1 // pred_check
      _
    $region15: #{tpu_custom_call.1} parent=1 // pred_check_branch
      %18 = sbr.rel (0) target = $region17
    $region16: #{tpu_custom_call.1} parent=1 // pred_region
      _
    $region17: #{tpu_custom_call.1} parent=1 // pred_fallthru
      _
    // Predicated region
    $region18: #{tpu_custom_call.1} parent=1 // pred_check
      _
    $region19: #{tpu_custom_call.1} parent=1 // pred_check_branch
      %20 = sbr.rel (0) target = $region21
    $region20: #{tpu_custom_call.1} parent=1 // pred_region
      _
    $region21: #{tpu_custom_call.1} parent=1 // pred_fallthru
      _
    %v21 = vld [vmem:[%s2] sm:$0x3]
    %v22 = vld [vmem:[%s4] sm:$0x1]
    %v23 = vld [vmem:[%s0] sm:$0xff]
    %v24 = vld [vmem:[%s1] sm:$0xff]
    %v25 = vld [vmem:[%s1 + $0x8] sm:$0xff]
    %v26 = vld [vmem:[%s1 + $0x10] sm:$0xff]
    %v27 = vld [vmem:[%s1 + $0x18] sm:$0xff]
    %v28 = vld [vmem:[%s1 + $0x20] sm:$0xf]
    %v29 = vld [vmem:[%s1 + $0x28] sm:$0xf]
    %v31 = vlaneseq
    %v32 = vshrl.u32 %v31, 7
    %v33 = vsub.s32 0, %v32
    %v34 = vrot.slane %v21, %v33
    %v35 = vlaneseq
    %v36 = vshrl.u32 %v35, 7
    %v37 = vsub.s32 1, %v36
    %v38 = vrot.slane %v21, %v37
    %vm41 = vcmask 162816
    %v43 = vsel %vm41, %v23, 0
    %vm45 = vcmask 1043456
    %v47 = vsel %vm45, %v28, 0
    %v50 = vsel %vm45, %v29, 0
    %52 = vmatprep.subr.mxu0 %v25
    %53 = vmatpush1.msra.mxu0 %v24
    %54 = vmatprep.subr.mxu0 %v27
    %55 = vmatpush1.msra.mxu0 %v26
    %56 = vmatprep.subr.mxu0 %v50
    %57 = vmatpush1.msra.mxu0 %v47
    %58 = vmatprep.subr.mxu0 0.0
    %59 = vmatpush1.msra.mxu0 0.0
    %60 = vmatprep.subr.mxu0 0.0
    %61 = vmatpush1.msra.mxu0 0.0
    %62 = vmatprep.subr.mxu0 0.0
    %63 = vmatpush1.msra.mxu0 0.0
    %64 = vmatprep.subr.mxu0 0.0
    %65 = vmatpush1.msra.mxu0 0.0
    %66 = vmatprep.subr.mxu0 0.0
    %67 = vmatpush1.msra.mxu0 0.0
    %68 = vmatprep.subr.mxu0 0.0
    %69 = vmatpush1.msra.mxu0 0.0
    %70 = vmatprep.subr.mxu0 0.0
    %71 = vmatpush1.msra.mxu0 0.0
    %72 = vmatprep.subr.mxu0 0.0
    %73 = vmatpush1.msra.mxu0 0.0
    %74 = vmatprep.subr.mxu0 0.0
    %75 = vmatpush1.msra.mxu0 0.0
    %76 = vmatprep.subr.mxu0 0.0
    %77 = vmatpush1.msra.mxu0 0.0
    %78 = vmatprep.subr.mxu0 0.0
    %79 = vmatpush1.msra.mxu0 0.0
    %80 = vmatprep.subr.mxu0 0.0
    %81 = vmatpush1.msra.mxu0 0.0
    %82 = vmatprep.subr.mxu0 0.0
    %83 = vmatpush1.msra.mxu0 0.0
    %84 = vmatprep.subr.mxu0 0.0
    %85 = vmatpush1.msra.mxu0 0.0
    %86 = vmatprep.subr.mxu0 0.0
    %87 = vmatpush1.msra.mxu0 0.0
    %88 = vmatprep.subr.mxu0 0.0
    %89 = vmatpush1.msra.mxu0 0.0
    %90 = vmatprep.subr.mxu0 0.0
    %91 = vmatpush1.msra.mxu0 0.0
    %92 = vmatprep.subr.mxu0 0.0
    %93 = vmatpush1.msra.mxu0 0.0
    %94 = vmatprep.subr.mxu0 0.0
    %95 = vmatpush1.msra.mxu0 0.0
    %96 = vmatprep.subr.mxu0 0.0
    %97 = vmatpush1.msra.mxu0 0.0
    %98 = vmatprep.subr.mxu0 0.0
    %99 = vmatpush1.msra.mxu0 0.0
    %100 = vmatprep.subr.mxu0 0.0
    %101 = vmatpush1.msra.mxu0 0.0
    %102 = vmatprep.subr.mxu0 0.0
    %103 = vmatpush1.msra.mxu0 0.0
    %104 = vmatprep.subr.mxu0 0.0
    %105 = vmatpush1.msra.mxu0 0.0
    %106 = vmatprep.subr.mxu0 0.0
    %107 = vmatpush1.msra.mxu0 0.0
    %108 = vmatprep.subr.mxu0 0.0
    %109 = vmatpush1.msra.mxu0 0.0
    %110 = vmatprep.subr.mxu0 0.0
    %111 = vmatpush1.msra.mxu0 0.0
    %112 = vmatprep.subr.mxu0 0.0
    %113 = vmatpush1.msra.mxu0 0.0
    %114 = vmatprep.subr.mxu0 0.0
    %115 = vmatpush1.msra.mxu0 0.0
    %116 = vmatprep.mubr.f32.mxu0 0.0
    %117 = vmatmul.mubr.f32.gmra.mrb[0].mxu0 %v43
    %v118 = vpop.f32.mrb[0].mxu0
    %v119 = vadd.f32 %v34, %v118
    %v120 = vpop.f32.mrb[0].mxu0
    %v121 = vadd.f32 %v38, %v120
    %122 = vdwg.mxu0
    %v123 = vmax.f32 %v119, 0.0
    %v124 = vmax.f32 %v121, 0.0
    %v125 = vld [vmem:[%s3] sm:$0xff]
    %v126 = vld [vmem:[%s3 + $0x8] sm:$0xff]
    %v127 = vld [vmem:[%s3 + $0x10] sm:$0xff]
    %v128 = vld [vmem:[%s3 + $0x18] sm:$0xff]
    %v129 = vld [vmem:[%s3 + $0x20] sm:$0xff]
    %v130 = vld [vmem:[%s3 + $0x28] sm:$0xff]
    %v131 = vld [vmem:[%s3 + $0x30] sm:$0xff]
    %v132 = vld [vmem:[%s3 + $0x38] sm:$0xff]
    %v133 = vld [vmem:[%s3 + $0x40] sm:$0xff]
    %v134 = vld [vmem:[%s3 + $0x48] sm:$0xff]
    %v135 = vld [vmem:[%s3 + $0x50] sm:$0xff]
    %v136 = vld [vmem:[%s3 + $0x58] sm:$0xff]
    %v137 = vld [vmem:[%s3 + $0x60] sm:$0xff]
    %v138 = vld [vmem:[%s3 + $0x68] sm:$0xff]
    %v139 = vld [vmem:[%s3 + $0x70] sm:$0xff]
    %v140 = vld [vmem:[%s3 + $0x78] sm:$0xff]
    %v141 = vld [vmem:[%s3 + $0x80] sm:$0xff]
    %v142 = vld [vmem:[%s3 + $0x88] sm:$0xff]
    %v143 = vld [vmem:[%s3 + $0x90] sm:$0xff]
    %v144 = vld [vmem:[%s3 + $0x98] sm:$0xff]
    %v145 = vld [vmem:[%s3 + $0xa0] sm:$0xff]
    %v146 = vld [vmem:[%s3 + $0xa8] sm:$0xff]
    %v147 = vld [vmem:[%s3 + $0xb0] sm:$0xff]
    %v148 = vld [vmem:[%s3 + $0xb8] sm:$0xff]
    %v149 = vld [vmem:[%s3 + $0xc0] sm:$0xff]
    %v150 = vld [vmem:[%s3 + $0xc8] sm:$0xff]
    %v151 = vld [vmem:[%s3 + $0xd0] sm:$0xff]
    %v152 = vld [vmem:[%s3 + $0xd8] sm:$0xff]
    %v153 = vld [vmem:[%s3 + $0xe0] sm:$0xff]
    %v154 = vld [vmem:[%s3 + $0xe8] sm:$0xff]
    %v155 = vld [vmem:[%s3 + $0xf0] sm:$0xff]
    %v156 = vld [vmem:[%s3 + $0xf8] sm:$0xff]
    %v158 = vlaneseq
    %v159 = vshrl.u32 %v158, 7
    %v160 = vsub.s32 0, %v159
    %v161 = vrot.slane %v22, %v160
    %163 = vmatprep.subr.mxu0 0.0
    %164 = vmatpush1.msra.mxu0 %v125
    %165 = vmatprep.subr.mxu0 0.0
    %166 = vmatpush1.msra.mxu0 %v126
    %167 = vmatprep.subr.mxu0 0.0
    %168 = vmatpush1.msra.mxu0 %v127
    %169 = vmatprep.subr.mxu0 0.0
    %170 = vmatpush1.msra.mxu0 %v128
    %171 = vmatprep.subr.mxu0 0.0
    %172 = vmatpush1.msra.mxu0 %v129
    %173 = vmatprep.subr.mxu0 0.0
    %174 = vmatpush1.msra.mxu0 %v130
    %175 = vmatprep.subr.mxu0 0.0
    %176 = vmatpush1.msra.mxu0 %v131
    %177 = vmatprep.subr.mxu0 0.0
    %178 = vmatpush1.msra.mxu0 %v132
    %179 = vmatprep.subr.mxu0 0.0
    %180 = vmatpush1.msra.mxu0 %v133
    %181 = vmatprep.subr.mxu0 0.0
    %182 = vmatpush1.msra.mxu0 %v134
    %183 = vmatprep.subr.mxu0 0.0
    %184 = vmatpush1.msra.mxu0 %v135
    %185 = vmatprep.subr.mxu0 0.0
    %186 = vmatpush1.msra.mxu0 %v136
    %187 = vmatprep.subr.mxu0 0.0
    %188 = vmatpush1.msra.mxu0 %v137
    %189 = vmatprep.subr.mxu0 0.0
    %190 = vmatpush1.msra.mxu0 %v138
    %191 = vmatprep.subr.mxu0 0.0
    %192 = vmatpush1.msra.mxu0 %v139
    %193 = vmatprep.subr.mxu0 0.0
    %194 = vmatpush1.msra.mxu0 %v140
    %195 = vmatprep.subr.mxu0 0.0
    %196 = vmatpush1.msra.mxu0 %v141
    %197 = vmatprep.subr.mxu0 0.0
    %198 = vmatpush1.msra.mxu0 %v142
    %199 = vmatprep.subr.mxu0 0.0
    %200 = vmatpush1.msra.mxu0 %v143
    %201 = vmatprep.subr.mxu0 0.0
    %202 = vmatpush1.msra.mxu0 %v144
    %203 = vmatprep.subr.mxu0 0.0
    %204 = vmatpush1.msra.mxu0 %v145
    %205 = vmatprep.subr.mxu0 0.0
    %206 = vmatpush1.msra.mxu0 %v146
    %207 = vmatprep.subr.mxu0 0.0
    %208 = vmatpush1.msra.mxu0 %v147
    %209 = vmatprep.subr.mxu0 0.0
    %210 = vmatpush1.msra.mxu0 %v148
    %211 = vmatprep.subr.mxu0 0.0
    %212 = vmatpush1.msra.mxu0 %v149
    %213 = vmatprep.subr.mxu0 0.0
    %214 = vmatpush1.msra.mxu0 %v150
    %215 = vmatprep.subr.mxu0 0.0
    %216 = vmatpush1.msra.mxu0 %v151
    %217 = vmatprep.subr.mxu0 0.0
    %218 = vmatpush1.msra.mxu0 %v152
    %219 = vmatprep.subr.mxu0 0.0
    %220 = vmatpush1.msra.mxu0 %v153
    %221 = vmatprep.subr.mxu0 0.0
    %222 = vmatpush1.msra.mxu0 %v154
    %223 = vmatprep.subr.mxu0 0.0
    %224 = vmatpush1.msra.mxu0 %v155
    %225 = vmatprep.subr.mxu0 0.0
    %226 = vmatpush1.msra.mxu0 %v156
    %227 = vmatprep.mubr.f32.mxu0 %v124
    %228 = vmatmul.mubr.f32.gmra.mrb[0].mxu0 %v123
    %v229 = vpop.f32.mrb[0].mxu0
    %v230 = vadd.f32 %v161, %v229
    %v231 = vpop.f32.mrb[0].mxu0
    %232 = vdwg.mxu0
    %vm233 = vcmask 80896
    %234 = vst.msk [vmem:[#allocation2] sm:$0xff] %vm233, %v230
    // Predicated region
    $region22: #{tpu_custom_call.1} parent=1 // pred_check
      _
    $region23: #{tpu_custom_call.1} parent=1 // pred_check_branch
      %236 = sbr.rel (0) target = $region25
    $region24: #{tpu_custom_call.1} parent=1 // pred_region
      %s238 = ssub.s32 128, 32
      %239 = vsyncadd [#allocation3], %s238
      %s240 = sshll.u32 [#allocation2], 4
      %s241 = int_to_ptr.vmem [resolvable:$true] %s240
      %246 = dma.vmem_to_hbm [thread:$0]  %s241, 32, %s5, [#allocation3], 32, 32, 2
    $region25: #{tpu_custom_call.1} parent=1 // pred_fallthru
      _
    // Predicated region
    $region26: #{tpu_custom_call.1} parent=1 // pred_check
      _
    $region27: #{tpu_custom_call.1} parent=1 // pred_check_branch
      %248 = sbr.rel (0) target = $region29
    $region28: #{tpu_custom_call.1} parent=1 // pred_region
      %249 = dma.done [#allocation3], 128
    $region29: #{tpu_custom_call.1} parent=1 // pred_fallthru
      _
    %250 = vsyncpa [#allocation3], 1

</llo_original>
